<compile_context>
chip_gen: v6e
topology: v6e:2x2x1
jax: 0.10.0
libtpu: 0.0.40
codegen_flags: <defaults>
</compile_context>

<pallas_src>
import math

import jax
import jax.numpy as jnp
from jax.experimental import pallas as pl
from jax.experimental.pallas import tpu as pltpu


def _make_kernel(action_bound: float, S: int, A: int):
    log_sqrt_2pi = 0.5 * math.log(2.0 * math.pi)

    def kernel(xe_ref, w1_ref, b1_ref, wh_ref, bh_ref, out_ref):
        # Everything is transposed: batch lives on the lane (last) axis.
        xe = xe_ref[...]                 # [S+A, TB]   rows = (x | eps)
        x_t = xe[:S, :]                  # [S,  TB]
        eps_t = xe[S:, :]                # [A,  TB]

        # ---- fc1 + relu:  W1^T[H,S] @ x^T[S,TB] -> [H, TB] (lane-dense) -------
        h = jnp.dot(w1_ref[...], x_t, preferred_element_type=jnp.float32)
        h = jnp.maximum(h + b1_ref[...], 0.0)          # b1^T is [H,1], lane-broadcast once

        # ---- fused mu/std head: Wh^T[2A,H] @ h^T[H,TB] -> [2A, TB] ------------
        y = jnp.dot(wh_ref[...], h, preferred_element_type=jnp.float32) + bh_ref[...]
        mu = y[:A, :]                    # [A, TB]
        std_pre = y[A:, :]               # [A, TB]

        # numerically-stable softplus
        std = jnp.maximum(std_pre, 0.0) + jnp.log1p(jnp.exp(-jnp.abs(std_pre)))

        # reparameterized sample
        sample = mu + std * eps_t

        # Normal(mu, std).log_prob(sample); (sample-mu)^2/(2 std^2) == 0.5*eps^2
        log_prob = -0.5 * (eps_t * eps_t) - jnp.log(std) - log_sqrt_2pi

        # tanh squash + (double-tanh) correction, exactly as the PyTorch forward does
        action = jnp.tanh(sample)
        log_prob = log_prob - jnp.log(1.0 - jnp.tanh(action) ** 2 + 1e-07)
        action = action * action_bound

        # two direct sublane-slice stores: no lane-axis concat, lane-dense writes
        out_ref[:A, :] = action.astype(out_ref.dtype)
        out_ref[A:, :] = log_prob.astype(out_ref.dtype)

    return kernel


def policy_net_continuous(x, params, eps, action_bound):
    """x: [B, state_dim] f32, eps: [B, action_dim] f32.
    Returns (action [B, A], log_prob [B, A])."""
    w1, b1, wmu, bmu, wstd, bstd = params
    B, S = x.shape
    H = w1.shape[1]
    A = wmu.shape[1]

    # --- wrapper-side packing / transposition (layout plumbing, done once) -----
    xe_t = jnp.concatenate([x, eps], axis=1).T           # [S+A, B]   batch on lanes
    w1t = w1.T                                           # [H, S]
    b1t = b1.reshape(H, 1)                               # [H, 1]
    wh_t = jnp.concatenate([wmu, wstd], axis=1).T        # [2A, H]
    bh_t = jnp.concatenate([bmu, bstd], axis=1).reshape(2 * A, 1)   # [2A, 1]

    # --- batch tiling (batch is the lane axis) ---------------------------------
    # Large tile amortizes the ~0.35 us per-grid-step overhead; VMEM use stays tiny
    # (xe tile at TB=2048 ~= 48 KiB, x2 buffers), well under the 32 MiB default
    # scoped VMEM on v7x (64 MiB physical) -- no vmem_limit_bytes override needed.
    TB = 2048
    if B <= TB:
        tb = B                      # block == full array -> no (8,128) constraint
        b_pad = B
        n_blocks = 1
    else:
        n_blocks = -(-B // TB)
        # v7x has 2 TensorCores: keep the "parallel" batch axis an even number of
        # equal blocks so both cores stay busy (no-op on single-TC v5e/v6e).
        if n_blocks % 2:
            n_blocks += 1
        tb = ((-(-B // n_blocks) + 127) // 128) * 128    # 128-lane-aligned tile
        b_pad = tb * n_blocks
        xe_t = jnp.pad(xe_t, ((0, 0), (0, b_pad - B)))
    grid = (n_blocks,)

    out = pl.pallas_call(
        _make_kernel(float(action_bound), S, A),
        out_shape=jax.ShapeDtypeStruct((2 * A, b_pad), jnp.float32),
        grid=grid,
        in_specs=[
            pl.BlockSpec((S + A, tb), lambda i: (0, i)),     # (x|eps)^T  tiled over batch
            pl.BlockSpec((H, S), lambda i: (0, 0)),          # W1^T       VMEM-resident
            pl.BlockSpec((H, 1), lambda i: (0, 0)),          # b1^T       VMEM-resident
            pl.BlockSpec((2 * A, H), lambda i: (0, 0)),      # (Wmu|Wstd)^T resident
            pl.BlockSpec((2 * A, 1), lambda i: (0, 0)),      # (bmu|bstd)^T resident
        ],
        out_specs=pl.BlockSpec((2 * A, tb), lambda i: (0, i)),  # lane-dense [2A, b_pad]
        compiler_params=pltpu.CompilerParams(
            dimension_semantics=("parallel",)),
    )(xe_t, w1t, b1t, wh_t, bh_t)

    action = out[:A, :B].T
    log_prob = out[A:, :B].T
    return action, log_prob


def init_params(key, state_dim, hidden_dim, action_dim):
    """Deterministic Linear-style init; weights stored as [in, out]."""
    ks = jax.random.split(key, 6)

    def linear(kw, kb, fan_in, fan_out):
        bound = 1.0 / math.sqrt(fan_in)
        w = jax.random.uniform(kw, (fan_in, fan_out), jnp.float32, -bound, bound)
        b = jax.random.uniform(kb, (1, fan_out), jnp.float32, -bound, bound)
        return w, b

    w1, b1 = linear(ks[0], ks[1], state_dim, hidden_dim)
    wmu, bmu = linear(ks[2], ks[3], hidden_dim, action_dim)
    wstd, bstd = linear(ks[4], ks[5], hidden_dim, action_dim)
    return (w1, b1, wmu, bmu, wstd, bstd)


def _reference(x, params, eps, action_bound):
    w1, b1, wmu, bmu, wstd, bstd = params
    h = jax.nn.relu(x @ w1 + b1)
    mu = h @ wmu + bmu
    std = jax.nn.softplus(h @ wstd + bstd)
    sample = mu + std * eps
    log_prob = -((sample - mu) ** 2) / (2 * std**2) - jnp.log(std) - 0.5 * jnp.log(2 * jnp.pi)
    action = jnp.tanh(sample)
    log_prob = log_prob - jnp.log(1 - jnp.tanh(action) ** 2 + 1e-07)
    return action * action_bound, log_prob


if __name__ == "__main__":
    # CartPole-ish dims: state_dim=4, hidden_dim=128, action_dim=2, scalar action_bound.
    batch, state_dim, hidden_dim, action_dim = 2, 4, 128, 2
    action_bound = 2.0

    key = jax.random.PRNGKey(0)
    k_x, k_p, k_eps = jax.random.split(key, 3)

    x = jax.random.normal(k_x, (batch, state_dim), dtype=jnp.float32)
    params = init_params(k_p, state_dim, hidden_dim, action_dim)
    eps = jax.random.normal(k_eps, (batch, action_dim), dtype=jnp.float32)

    action, log_prob = policy_net_continuous(x, params, eps, action_bound)
    jax.block_until_ready((action, log_prob))

    # correctness check against a pure-JAX reference of the same math
    ref_action, ref_log_prob = _reference(x, params, eps, action_bound)
    assert jnp.allclose(action, ref_action, atol=1e-5, rtol=1e-5)
    assert jnp.allclose(log_prob, ref_log_prob, atol=1e-5, rtol=1e-5)

    # single-block, non-128-aligned batch path
    mid_b = 1030
    xm = jax.random.normal(k_x, (mid_b, state_dim), dtype=jnp.float32)
    epsm = jax.random.normal(k_eps, (mid_b, action_dim), dtype=jnp.float32)
    am, lm = policy_net_continuous(xm, params, epsm, action_bound)
    jax.block_until_ready((am, lm))
    ram, rlm = _reference(xm, params, epsm, action_bound)
    assert jnp.allclose(am, ram, atol=1e-5, rtol=1e-5)
    assert jnp.allclose(lm, rlm, atol=1e-5, rtol=1e-5)

    # multi-block (tiled + padded, even grid) batch path
    big_b = 4100
    xb = jax.random.normal(k_x, (big_b, state_dim), dtype=jnp.float32)
    epsb = jax.random.normal(k_eps, (big_b, action_dim), dtype=jnp.float32)
    ab, lb = policy_net_continuous(xb, params, epsb, action_bound)
    jax.block_until_ready((ab, lb))
    rab, rlb = _reference(xb, params, epsb, action_bound)
    assert jnp.allclose(ab, rab, atol=1e-5, rtol=1e-5)
    assert jnp.allclose(lb, rlb, atol=1e-5, rtol=1e-5)

    print("KERNEL_OK")
</pallas_src>

<mosaic_0001>
module attributes {stable_mosaic.version = 11 : i64} {
  func.func @kernel(%arg0: i32, %arg1: memref<6x2xf32, #tpu.memory_space<vmem>>, %arg2: memref<128x4xf32, #tpu.memory_space<vmem>>, %arg3: memref<128x1xf32, #tpu.memory_space<vmem>>, %arg4: memref<4x128xf32, #tpu.memory_space<vmem>>, %arg5: memref<4x1xf32, #tpu.memory_space<vmem>>, %arg6: memref<4x2xf32, #tpu.memory_space<vmem>>) attributes {dimension_semantics = [#tpu.dimension_semantics<parallel>], iteration_bounds = array<i64: 1>, scalar_prefetch = 0 : i64, scratch_operands = 0 : i64, tpu.core_type = #tpu.core_type<tc>, window_params = [{transform_indices = @transform_0, window_bounds = array<i64: 6, 2>}, {pipeline_mode = #tpu.pipeline_mode<synchronous>, transform_indices = @transform_1, window_bounds = array<i64: 128, 4>}, {pipeline_mode = #tpu.pipeline_mode<synchronous>, transform_indices = @transform_2, window_bounds = array<i64: 128, 1>}, {pipeline_mode = #tpu.pipeline_mode<synchronous>, transform_indices = @transform_3, window_bounds = array<i64: 4, 128>}, {pipeline_mode = #tpu.pipeline_mode<synchronous>, transform_indices = @transform_4, window_bounds = array<i64: 4, 1>}, {transform_indices = @transform_5, window_bounds = array<i64: 4, 2>}]} {
    %c0 = arith.constant 0 : index
    %c0_0 = arith.constant 0 : index
    %0 = vector.load %arg1[%c0, %c0_0] : memref<6x2xf32, #tpu.memory_space<vmem>>, vector<6x2xf32>
    %1 = vector.extract_strided_slice %0 {offsets = [0, 0], sizes = [4, 2], strides = [1, 1]} : vector<6x2xf32> to vector<4x2xf32>
    %2 = vector.extract_strided_slice %0 {offsets = [4, 0], sizes = [2, 2], strides = [1, 1]} : vector<6x2xf32> to vector<2x2xf32>
    %c0_1 = arith.constant 0 : index
    %c0_2 = arith.constant 0 : index
    %3 = vector.load %arg2[%c0_1, %c0_2] : memref<128x4xf32, #tpu.memory_space<vmem>>, vector<128x4xf32>
    %cst = arith.constant dense<0.000000e+00> : vector<128x2xf32>
    %4 = tpu.matmul %3, %1, %cst {dimension_numbers = #tpu.dot_dimension_numbers<[1], [0], [0], [1], [0, 0, 1, 1], [], []>} : vector<128x4xf32>, vector<4x2xf32>, vector<128x2xf32> -> vector<128x2xf32>
    %c0_3 = arith.constant 0 : index
    %c0_4 = arith.constant 0 : index
    %5 = vector.load %arg3[%c0_3, %c0_4] : memref<128x1xf32, #tpu.memory_space<vmem>>, vector<128x1xf32>
    %6 = vector.broadcast %5 : vector<128x1xf32> to vector<128x2xf32>
    %7 = arith.addf %4, %6 : vector<128x2xf32>
    %cst_5 = arith.constant 0.000000e+00 : f32
    %8 = vector.broadcast %cst_5 : f32 to vector<128x2xf32>
    %9 = arith.maximumf %7, %8 : vector<128x2xf32>
    %c0_6 = arith.constant 0 : index
    %c0_7 = arith.constant 0 : index
    %10 = vector.load %arg4[%c0_6, %c0_7] : memref<4x128xf32, #tpu.memory_space<vmem>>, vector<4x128xf32>
    %cst_8 = arith.constant dense<0.000000e+00> : vector<4x2xf32>
    %11 = tpu.matmul %10, %9, %cst_8 {dimension_numbers = #tpu.dot_dimension_numbers<[1], [0], [0], [1], [0, 0, 1, 1], [], []>} : vector<4x128xf32>, vector<128x2xf32>, vector<4x2xf32> -> vector<4x2xf32>
    %c0_9 = arith.constant 0 : index
    %c0_10 = arith.constant 0 : index
    %12 = vector.load %arg5[%c0_9, %c0_10] : memref<4x1xf32, #tpu.memory_space<vmem>>, vector<4x1xf32>
    %13 = vector.broadcast %12 : vector<4x1xf32> to vector<4x2xf32>
    %14 = arith.addf %11, %13 : vector<4x2xf32>
    %15 = vector.extract_strided_slice %14 {offsets = [0, 0], sizes = [2, 2], strides = [1, 1]} : vector<4x2xf32> to vector<2x2xf32>
    %16 = vector.extract_strided_slice %14 {offsets = [2, 0], sizes = [2, 2], strides = [1, 1]} : vector<4x2xf32> to vector<2x2xf32>
    %cst_11 = arith.constant 0.000000e+00 : f32
    %17 = vector.broadcast %cst_11 : f32 to vector<2x2xf32>
    %18 = arith.maximumf %16, %17 : vector<2x2xf32>
    %19 = math.absf %16 : vector<2x2xf32>
    %cst_12 = arith.constant 0.000000e+00 : f32
    %20 = vector.broadcast %cst_12 : f32 to vector<2x2xf32>
    %21 = arith.subf %20, %19 : vector<2x2xf32>
    %22 = math.exp %21 : vector<2x2xf32>
    %23 = math.log1p %22 : vector<2x2xf32>
    %24 = arith.addf %18, %23 : vector<2x2xf32>
    %25 = arith.mulf %24, %2 : vector<2x2xf32>
    %26 = arith.addf %15, %25 : vector<2x2xf32>
    %27 = arith.mulf %2, %2 : vector<2x2xf32>
    %cst_13 = arith.constant -5.000000e-01 : f32
    %28 = vector.broadcast %cst_13 : f32 to vector<2x2xf32>
    %29 = arith.mulf %28, %27 : vector<2x2xf32>
    %30 = math.log %24 : vector<2x2xf32>
    %31 = arith.subf %29, %30 : vector<2x2xf32>
    %cst_14 = arith.constant 0.918938517 : f32
    %32 = vector.broadcast %cst_14 : f32 to vector<2x2xf32>
    %33 = arith.subf %31, %32 : vector<2x2xf32>
    %34 = math.tanh %26 : vector<2x2xf32>
    %35 = math.tanh %34 : vector<2x2xf32>
    %36 = arith.mulf %35, %35 : vector<2x2xf32>
    %cst_15 = arith.constant 1.000000e+00 : f32
    %37 = vector.broadcast %cst_15 : f32 to vector<2x2xf32>
    %38 = arith.subf %37, %36 : vector<2x2xf32>
    %cst_16 = arith.constant 1.000000e-07 : f32
    %39 = vector.broadcast %cst_16 : f32 to vector<2x2xf32>
    %40 = arith.addf %38, %39 : vector<2x2xf32>
    %41 = math.log %40 : vector<2x2xf32>
    %42 = arith.subf %33, %41 : vector<2x2xf32>
    %cst_17 = arith.constant 2.000000e+00 : f32
    %43 = vector.broadcast %cst_17 : f32 to vector<2x2xf32>
    %44 = arith.mulf %34, %43 : vector<2x2xf32>
    %c0_18 = arith.constant 0 : index
    %c0_19 = arith.constant 0 : index
    %45 = vector.load %arg6[%c0_18, %c0_19] : memref<4x2xf32, #tpu.memory_space<vmem>>, vector<2x2xf32>
    tpu.vector_store %arg6[%c0_18, %c0_19], %44 {strides = array<i32>} : memref<4x2xf32, #tpu.memory_space<vmem>>, vector<2x2xf32>,
    %c2 = arith.constant 2 : index
    %c0_20 = arith.constant 0 : index
    %46 = vector.load %arg6[%c2, %c0_20] : memref<4x2xf32, #tpu.memory_space<vmem>>, vector<2x2xf32>
    tpu.vector_store %arg6[%c2, %c0_20], %42 {strides = array<i32>} : memref<4x2xf32, #tpu.memory_space<vmem>>, vector<2x2xf32>,
    return
  }
  func.func @transform_0(%arg0: i32) -> (i32, i32) {
    %c0_i32 = arith.constant 0 : i32
    %c0_i32_0 = arith.constant 0 : i32
    return %c0_i32, %arg0 : i32, i32
  }
  func.func @transform_1(%arg0: i32) -> (i32, i32) {
    %c0_i32 = arith.constant 0 : i32
    %c0_i32_0 = arith.constant 0 : i32
    %c0_i32_1 = arith.constant 0 : i32
    return %c0_i32, %c0_i32_0 : i32, i32
  }
  func.func @transform_2(%arg0: i32) -> (i32, i32) {
    %c0_i32 = arith.constant 0 : i32
    %c0_i32_0 = arith.constant 0 : i32
    %c0_i32_1 = arith.constant 0 : i32
    return %c0_i32, %c0_i32_0 : i32, i32
  }
  func.func @transform_3(%arg0: i32) -> (i32, i32) {
    %c0_i32 = arith.constant 0 : i32
    %c0_i32_0 = arith.constant 0 : i32
    %c0_i32_1 = arith.constant 0 : i32
    return %c0_i32, %c0_i32_0 : i32, i32
  }
  func.func @transform_4(%arg0: i32) -> (i32, i32) {
    %c0_i32 = arith.constant 0 : i32
    %c0_i32_0 = arith.constant 0 : i32
    %c0_i32_1 = arith.constant 0 : i32
    return %c0_i32, %c0_i32_0 : i32, i32
  }
  func.func @transform_5(%arg0: i32) -> (i32, i32) {
    %c0_i32 = arith.constant 0 : i32
    %c0_i32_0 = arith.constant 0 : i32
    return %c0_i32, %arg0 : i32, i32
  }
}

</mosaic_0001>

<llo_original>
// kernel: tpu_custom_call.1
$region0: #{tpu_custom_call.1}
  #allocation0 [shape = 'u32[]', space=smem, size = 0x4, offset = 0x4, fixed_abs, tag = 'smem constant byte address 0x4 - core index']
  #allocation1 [shape = 'u32[144,128]{1,0:T(1,128)}', space=vmem, size = 0x12000, scoped, tag = 'internal scratch']
  %s0 = inlined_call_operand.vmem [shape: f32[6,2], index: 0, kind: input, shape index: {}]
  %s1 = inlined_call_operand.vmem [shape: f32[128,4], index: 1, kind: input, shape index: {}]
  %s2 = inlined_call_operand.vmem [shape: f32[128,1], index: 2, kind: input, shape index: {}]
  %s3 = inlined_call_operand.vmem [shape: f32[4,128], index: 3, kind: input, shape index: {}]
  %s4 = inlined_call_operand.vmem [shape: f32[4,1], index: 4, kind: input, shape index: {}]
  %s5 = inlined_call_operand.vmem [shape: f32[4,2], index: 5, kind: output, shape index: {}]
  %s6 = sld [smem:[#allocation0]]
  $region30: #{tpu_custom_call.1} parent=0
    _
  %s8 = ssub.s32 1, %s6
  %s9 = scalar_select 0, %s8, %s6
  // Predicated region
  $region2: #{tpu_custom_call.1} parent=0 // pred_check
    _
  $region3: #{tpu_custom_call.1} parent=0 // pred_check_branch
    %11 = sbr.rel (0) target = $region5
  $region4: #{tpu_custom_call.1} parent=0 // pred_region
    _
  $region5: #{tpu_custom_call.1} parent=0 // pred_fallthru
    _
  // Predicated region
  $region6: #{tpu_custom_call.1} parent=0 // pred_check
    _
  $region7: #{tpu_custom_call.1} parent=0 // pred_check_branch
    %13 = sbr.rel (0) target = $region9
  $region8: #{tpu_custom_call.1} parent=0 // pred_region
    _
  $region9: #{tpu_custom_call.1} parent=0 // pred_fallthru
    _
  // Predicated region
  $region10: #{tpu_custom_call.1} parent=0 // pred_check
    _
  $region11: #{tpu_custom_call.1} parent=0 // pred_check_branch
    %15 = sbr.rel (0) target = $region13
  $region12: #{tpu_custom_call.1} parent=0 // pred_region
    _
  $region13: #{tpu_custom_call.1} parent=0 // pred_fallthru
    _
  // Predicated region
  $region14: #{tpu_custom_call.1} parent=0 // pred_check
    _
  $region15: #{tpu_custom_call.1} parent=0 // pred_check_branch
    %17 = sbr.rel (0) target = $region17
  $region16: #{tpu_custom_call.1} parent=0 // pred_region
    _
  $region17: #{tpu_custom_call.1} parent=0 // pred_fallthru
    _
  // Predicated region
  $region18: #{tpu_custom_call.1} parent=0 // pred_check
    _
  $region19: #{tpu_custom_call.1} parent=0 // pred_check_branch
    %19 = sbr.rel (0) target = $region21
  $region20: #{tpu_custom_call.1} parent=0 // pred_region
    _
  $region21: #{tpu_custom_call.1} parent=0 // pred_fallthru
    _
  %v20 = vld [vmem:[%s0] sm:$0x3f]
  %v21 = vld [vmem:[%s1] sm:$0xff]
  %v22 = vld [vmem:[%s1 + $0x8] sm:$0xff]
  %v23 = vld [vmem:[%s1 + $0x10] sm:$0xff]
  %v24 = vld [vmem:[%s1 + $0x18] sm:$0xff]
  %v25 = vld [vmem:[%s1 + $0x20] sm:$0xff]
  %v26 = vld [vmem:[%s1 + $0x28] sm:$0xff]
  %v27 = vld [vmem:[%s1 + $0x30] sm:$0xff]
  %v28 = vld [vmem:[%s1 + $0x38] sm:$0xff]
  %v29 = vld [vmem:[%s1 + $0x40] sm:$0xff]
  %v30 = vld [vmem:[%s1 + $0x48] sm:$0xff]
  %v31 = vld [vmem:[%s1 + $0x50] sm:$0xff]
  %v32 = vld [vmem:[%s1 + $0x58] sm:$0xff]
  %v33 = vld [vmem:[%s1 + $0x60] sm:$0xff]
  %v34 = vld [vmem:[%s1 + $0x68] sm:$0xff]
  %v35 = vld [vmem:[%s1 + $0x70] sm:$0xff]
  %v36 = vld [vmem:[%s1 + $0x78] sm:$0xff]
  %v37 = vld [vmem:[%s2] sm:$0xff]
  %v38 = vld [vmem:[%s2 + $0x8] sm:$0xff]
  %v39 = vld [vmem:[%s2 + $0x10] sm:$0xff]
  %v40 = vld [vmem:[%s2 + $0x18] sm:$0xff]
  %v41 = vld [vmem:[%s2 + $0x20] sm:$0xff]
  %v42 = vld [vmem:[%s2 + $0x28] sm:$0xff]
  %v43 = vld [vmem:[%s2 + $0x30] sm:$0xff]
  %v44 = vld [vmem:[%s2 + $0x38] sm:$0xff]
  %v45 = vld [vmem:[%s2 + $0x40] sm:$0xff]
  %v46 = vld [vmem:[%s2 + $0x48] sm:$0xff]
  %v47 = vld [vmem:[%s2 + $0x50] sm:$0xff]
  %v48 = vld [vmem:[%s2 + $0x58] sm:$0xff]
  %v49 = vld [vmem:[%s2 + $0x60] sm:$0xff]
  %v50 = vld [vmem:[%s2 + $0x68] sm:$0xff]
  %v51 = vld [vmem:[%s2 + $0x70] sm:$0xff]
  %v52 = vld [vmem:[%s2 + $0x78] sm:$0xff]
  %54 = vset.pattern.permute.xlu0 0
  %55 = vperm.xlu0 %54, %v37
  %v56 = vpop.permute.xlu0 %55
  %59 = vset.pattern.permute.xlu0 0
  %60 = vperm.xlu0 %59, %v38
  %v61 = vpop.permute.xlu0 %60
  %64 = vset.pattern.permute.xlu0 0
  %65 = vperm.xlu0 %64, %v39
  %v66 = vpop.permute.xlu0 %65
  %69 = vset.pattern.permute.xlu0 0
  %70 = vperm.xlu0 %69, %v40
  %v71 = vpop.permute.xlu0 %70
  %74 = vset.pattern.permute.xlu0 0
  %75 = vperm.xlu0 %74, %v41
  %v76 = vpop.permute.xlu0 %75
  %79 = vset.pattern.permute.xlu0 0
  %80 = vperm.xlu0 %79, %v42
  %v81 = vpop.permute.xlu0 %80
  %84 = vset.pattern.permute.xlu0 0
  %85 = vperm.xlu0 %84, %v43
  %v86 = vpop.permute.xlu0 %85
  %89 = vset.pattern.permute.xlu0 0
  %90 = vperm.xlu0 %89, %v44
  %v91 = vpop.permute.xlu0 %90
  %94 = vset.pattern.permute.xlu0 0
  %95 = vperm.xlu0 %94, %v45
  %v96 = vpop.permute.xlu0 %95
  %99 = vset.pattern.permute.xlu0 0
  %100 = vperm.xlu0 %99, %v46
  %v101 = vpop.permute.xlu0 %100
  %104 = vset.pattern.permute.xlu0 0
  %105 = vperm.xlu0 %104, %v47
  %v106 = vpop.permute.xlu0 %105
  %109 = vset.pattern.permute.xlu0 0
  %110 = vperm.xlu0 %109, %v48
  %v111 = vpop.permute.xlu0 %110
  %114 = vset.pattern.permute.xlu0 0
  %115 = vperm.xlu0 %114, %v49
  %v116 = vpop.permute.xlu0 %115
  %119 = vset.pattern.permute.xlu0 0
  %120 = vperm.xlu0 %119, %v50
  %v121 = vpop.permute.xlu0 %120
  %124 = vset.pattern.permute.xlu0 0
  %125 = vperm.xlu0 %124, %v51
  %v126 = vpop.permute.xlu0 %125
  %129 = vset.pattern.permute.xlu0 0
  %130 = vperm.xlu0 %129, %v52
  %v131 = vpop.permute.xlu0 %130
  %vm133 = vcmask 31744
  %v135 = vsel %vm133, %v21, 0
  %v138 = vsel %vm133, %v22, 0
  %v141 = vsel %vm133, %v23, 0
  %v144 = vsel %vm133, %v24, 0
  %v147 = vsel %vm133, %v25, 0
  %v150 = vsel %vm133, %v26, 0
  %v153 = vsel %vm133, %v27, 0
  %v156 = vsel %vm133, %v28, 0
  %v159 = vsel %vm133, %v29, 0
  %v162 = vsel %vm133, %v30, 0
  %v165 = vsel %vm133, %v31, 0
  %v168 = vsel %vm133, %v32, 0
  %v171 = vsel %vm133, %v33, 0
  %v174 = vsel %vm133, %v34, 0
  %v177 = vsel %vm133, %v35, 0
  %v180 = vsel %vm133, %v36, 0
  %vm182 = vcmask 1043456
  %v184 = vsel %vm182, %v20, 0
  %186 = vmatprep.subr.mxu0 0.0
  %187 = vmatpush1.msra.mxu0 0.0
  %188 = vmatprep.subr.mxu0 0.0
  %189 = vmatpush1.msra.mxu0 0.0
  %190 = vmatprep.subr.mxu0 0.0
  %191 = vmatpush1.msra.mxu0 0.0
  %192 = vmatprep.subr.mxu0 0.0
  %193 = vmatpush1.msra.mxu0 0.0
  %194 = vmatprep.subr.mxu0 0.0
  %195 = vmatpush1.msra.mxu0 0.0
  %196 = vmatprep.subr.mxu0 0.0
  %197 = vmatpush1.msra.mxu0 0.0
  %198 = vmatprep.subr.mxu0 0.0
  %199 = vmatpush1.msra.mxu0 0.0
  %200 = vmatprep.subr.mxu0 0.0
  %201 = vmatpush1.msra.mxu0 0.0
  %202 = vmatprep.subr.mxu0 0.0
  %203 = vmatpush1.msra.mxu0 0.0
  %204 = vmatprep.subr.mxu0 0.0
  %205 = vmatpush1.msra.mxu0 0.0
  %206 = vmatprep.subr.mxu0 0.0
  %207 = vmatpush1.msra.mxu0 0.0
  %208 = vmatprep.subr.mxu0 0.0
  %209 = vmatpush1.msra.mxu0 0.0
  %210 = vmatprep.subr.mxu0 0.0
  %211 = vmatpush1.msra.mxu0 0.0
  %212 = vmatprep.subr.mxu0 0.0
  %213 = vmatpush1.msra.mxu0 0.0
  %214 = vmatprep.subr.mxu0 0.0
  %215 = vmatpush1.msra.mxu0 0.0
  %216 = vmatprep.subr.mxu0 0.0
  %217 = vmatpush1.msra.mxu0 %v184
  %218 = vmatprep.subr.mxu0 0.0
  %219 = vmatpush2.msra.mxu0 0.0
  %220 = vmatprep.subr.mxu0 0.0
  %221 = vmatpush2.msra.mxu0 0.0
  %222 = vmatprep.subr.mxu0 0.0
  %223 = vmatpush2.msra.mxu0 0.0
  %224 = vmatprep.subr.mxu0 0.0
  %225 = vmatpush2.msra.mxu0 0.0
  %226 = vmatprep.subr.mxu0 0.0
  %227 = vmatpush2.msra.mxu0 0.0
  %228 = vmatprep.subr.mxu0 0.0
  %229 = vmatpush2.msra.mxu0 0.0
  %230 = vmatprep.subr.mxu0 0.0
  %231 = vmatpush2.msra.mxu0 0.0
  %232 = vmatprep.subr.mxu0 0.0
  %233 = vmatpush2.msra.mxu0 0.0
  %234 = vmatprep.subr.mxu0 0.0
  %235 = vmatpush2.msra.mxu0 0.0
  %236 = vmatprep.subr.mxu0 0.0
  %237 = vmatpush2.msra.mxu0 0.0
  %238 = vmatprep.subr.mxu0 0.0
  %239 = vmatpush2.msra.mxu0 0.0
  %240 = vmatprep.subr.mxu0 0.0
  %241 = vmatpush2.msra.mxu0 0.0
  %242 = vmatprep.subr.mxu0 0.0
  %243 = vmatpush2.msra.mxu0 0.0
  %244 = vmatprep.subr.mxu0 0.0
  %245 = vmatpush2.msra.mxu0 0.0
  %246 = vmatprep.subr.mxu0 0.0
  %247 = vmatpush2.msra.mxu0 0.0
  %248 = vmatprep.subr.mxu0 0.0
  %249 = vmatpush2.msra.mxu0 0.0
  %250 = vmatprep.mubr.f32.mxu0 0.0
  %251 = vmatmul.mubr.f32.gmra.mxu0 %v135
  %v252 = vpop.f32.mrf.mxu0
  %v253 = vadd.f32 %v56, %v252
  %v254 = vpop.f32.mrf.mxu0
  %255 = vmatprep.mubr.f32.mxu0 0.0
  %256 = vmatmul.mubr.f32.gmra.mxu0 %v138
  %v257 = vpop.f32.mrf.mxu0
  %v258 = vadd.f32 %v61, %v257
  %v259 = vpop.f32.mrf.mxu0
  %260 = vmatprep.mubr.f32.mxu0 0.0
  %261 = vmatmul.mubr.f32.gmra.mxu0 %v141
  %v262 = vpop.f32.mrf.mxu0
  %v263 = vadd.f32 %v66, %v262
  %v264 = vpop.f32.mrf.mxu0
  %265 = vmatprep.mubr.f32.mxu0 0.0
  %266 = vmatmul.mubr.f32.gmra.mxu0 %v144
  %v267 = vpop.f32.mrf.mxu0
  %v268 = vadd.f32 %v71, %v267
  %v269 = vpop.f32.mrf.mxu0
  %270 = vmatprep.mubr.f32.mxu0 0.0
  %271 = vmatmul.mubr.f32.gmra.mxu0 %v147
  %v272 = vpop.f32.mrf.mxu0
  %v273 = vadd.f32 %v76, %v272
  %v274 = vpop.f32.mrf.mxu0
  %275 = vmatprep.mubr.f32.mxu0 0.0
  %276 = vmatmul.mubr.f32.gmra.mxu0 %v150
  %v277 = vpop.f32.mrf.mxu0
  %v278 = vadd.f32 %v81, %v277
  %v279 = vpop.f32.mrf.mxu0
  %280 = vmatprep.mubr.f32.mxu0 0.0
  %281 = vmatmul.mubr.f32.gmra.mxu0 %v153
  %v282 = vpop.f32.mrf.mxu0
  %v283 = vadd.f32 %v86, %v282
  %v284 = vpop.f32.mrf.mxu0
  %285 = vmatprep.mubr.f32.mxu0 0.0
  %286 = vmatmul.mubr.f32.gmra.mxu0 %v156
  %v287 = vpop.f32.mrf.mxu0
  %v288 = vadd.f32 %v91, %v287
  %v289 = vpop.f32.mrf.mxu0
  %290 = vmatprep.mubr.f32.mxu0 0.0
  %291 = vmatmul.mubr.f32.gmra.mxu0 %v159
  %v292 = vpop.f32.mrf.mxu0
  %v293 = vadd.f32 %v96, %v292
  %v294 = vpop.f32.mrf.mxu0
  %295 = vmatprep.mubr.f32.mxu0 0.0
  %296 = vmatmul.mubr.f32.gmra.mxu0 %v162
  %v297 = vpop.f32.mrf.mxu0
  %v298 = vadd.f32 %v101, %v297
  %v299 = vpop.f32.mrf.mxu0
  %300 = vmatprep.mubr.f32.mxu0 0.0
  %301 = vmatmul.mubr.f32.gmra.mxu0 %v165
  %v302 = vpop.f32.mrf.mxu0
  %v303 = vadd.f32 %v106, %v302
  %v304 = vpop.f32.mrf.mxu0
  %305 = vmatprep.mubr.f32.mxu0 0.0
  %306 = vmatmul.mubr.f32.gmra.mxu0 %v168
  %v307 = vpop.f32.mrf.mxu0
  %v308 = vadd.f32 %v111, %v307
  %v309 = vpop.f32.mrf.mxu0
  %310 = vmatprep.mubr.f32.mxu0 0.0
  %311 = vmatmul.mubr.f32.gmra.mxu0 %v171
  %v312 = vpop.f32.mrf.mxu0
  %v313 = vadd.f32 %v116, %v312
  %v314 = vpop.f32.mrf.mxu0
  %315 = vmatprep.mubr.f32.mxu0 0.0
  %316 = vmatmul.mubr.f32.gmra.mxu0 %v174
  %v317 = vpop.f32.mrf.mxu0
  %v318 = vadd.f32 %v121, %v317
  %v319 = vpop.f32.mrf.mxu0
  %320 = vmatprep.mubr.f32.mxu0 0.0
  %321 = vmatmul.mubr.f32.gmra.mxu0 %v177
  %v322 = vpop.f32.mrf.mxu0
  %v323 = vadd.f32 %v126, %v322
  %v324 = vpop.f32.mrf.mxu0
  %325 = vmatprep.mubr.f32.mxu0 0.0
  %326 = vmatmul.mubr.f32.gmra.mxu0 %v180
  %v327 = vpop.f32.mrf.mxu0
  %v328 = vadd.f32 %v131, %v327
  %v329 = vpop.f32.mrf.mxu0
  %330 = vdwg.mxu0
  %v331 = vmax.f32 %v253, 0.0
  %v332 = vmax.f32 %v258, 0.0
  %v333 = vmax.f32 %v263, 0.0
  %v334 = vmax.f32 %v268, 0.0
  %v335 = vmax.f32 %v273, 0.0
  %v336 = vmax.f32 %v278, 0.0
  %v337 = vmax.f32 %v283, 0.0
  %v338 = vmax.f32 %v288, 0.0
  %v339 = vmax.f32 %v293, 0.0
  %v340 = vmax.f32 %v298, 0.0
  %v341 = vmax.f32 %v303, 0.0
  %v342 = vmax.f32 %v308, 0.0
  %v343 = vmax.f32 %v313, 0.0
  %v344 = vmax.f32 %v318, 0.0
  %v345 = vmax.f32 %v323, 0.0
  %v346 = vmax.f32 %v328, 0.0
  %v347 = vld [vmem:[%s3] sm:$0xf]
  %v348 = vld [vmem:[%s4] sm:$0xf]
  %350 = vset.pattern.permute.xlu0 0
  %351 = vperm.xlu0 %350, %v348
  %v352 = vpop.permute.xlu0 %351
  %354 = vmatprep.subr.mxu0 0.0
  %355 = vmatpush1.msra.mxu0 %v346
  %356 = vmatprep.subr.mxu0 0.0
  %357 = vmatpush1.msra.mxu0 %v345
  %358 = vmatprep.subr.mxu0 0.0
  %359 = vmatpush1.msra.mxu0 %v344
  %360 = vmatprep.subr.mxu0 0.0
  %361 = vmatpush1.msra.mxu0 %v343
  %362 = vmatprep.subr.mxu0 0.0
  %363 = vmatpush1.msra.mxu0 %v342
  %364 = vmatprep.subr.mxu0 0.0
  %365 = vmatpush1.msra.mxu0 %v341
  %366 = vmatprep.subr.mxu0 0.0
  %367 = vmatpush1.msra.mxu0 %v340
  %368 = vmatprep.subr.mxu0 0.0
  %369 = vmatpush1.msra.mxu0 %v339
  %370 = vmatprep.subr.mxu0 0.0
  %371 = vmatpush1.msra.mxu0 %v338
  %372 = vmatprep.subr.mxu0 0.0
  %373 = vmatpush1.msra.mxu0 %v337
  %374 = vmatprep.subr.mxu0 0.0
  %375 = vmatpush1.msra.mxu0 %v336
  %376 = vmatprep.subr.mxu0 0.0
  %377 = vmatpush1.msra.mxu0 %v335
  %378 = vmatprep.subr.mxu0 0.0
  %379 = vmatpush1.msra.mxu0 %v334
  %380 = vmatprep.subr.mxu0 0.0
  %381 = vmatpush1.msra.mxu0 %v333
  %382 = vmatprep.subr.mxu0 0.0
  %383 = vmatpush1.msra.mxu0 %v332
  %384 = vmatprep.subr.mxu0 0.0
  %385 = vmatpush1.msra.mxu0 %v331
  %386 = vmatprep.subr.mxu0 0.0
  %387 = vmatpush2.msra.mxu0 0.0
  %388 = vmatprep.subr.mxu0 0.0
  %389 = vmatpush2.msra.mxu0 0.0
  %390 = vmatprep.subr.mxu0 0.0
  %391 = vmatpush2.msra.mxu0 0.0
  %392 = vmatprep.subr.mxu0 0.0
  %393 = vmatpush2.msra.mxu0 0.0
  %394 = vmatprep.subr.mxu0 0.0
  %395 = vmatpush2.msra.mxu0 0.0
  %396 = vmatprep.subr.mxu0 0.0
  %397 = vmatpush2.msra.mxu0 0.0
  %398 = vmatprep.subr.mxu0 0.0
  %399 = vmatpush2.msra.mxu0 0.0
  %400 = vmatprep.subr.mxu0 0.0
  %401 = vmatpush2.msra.mxu0 0.0
  %402 = vmatprep.subr.mxu0 0.0
  %403 = vmatpush2.msra.mxu0 0.0
  %404 = vmatprep.subr.mxu0 0.0
  %405 = vmatpush2.msra.mxu0 0.0
  %406 = vmatprep.subr.mxu0 0.0
  %407 = vmatpush2.msra.mxu0 0.0
  %408 = vmatprep.subr.mxu0 0.0
  %409 = vmatpush2.msra.mxu0 0.0
  %410 = vmatprep.subr.mxu0 0.0
  %411 = vmatpush2.msra.mxu0 0.0
  %412 = vmatprep.subr.mxu0 0.0
  %413 = vmatpush2.msra.mxu0 0.0
  %414 = vmatprep.subr.mxu0 0.0
  %415 = vmatpush2.msra.mxu0 0.0
  %416 = vmatprep.subr.mxu0 0.0
  %417 = vmatpush2.msra.mxu0 0.0
  %418 = vmatprep.mubr.f32.mxu0 0.0
  %419 = vmatmul.mubr.f32.gmra.mxu0 %v347
  %v420 = vpop.f32.mrf.mxu0
  %v421 = vadd.f32 %v352, %v420
  %v422 = vpop.f32.mrf.mxu0
  %423 = vdwg.mxu0
  %v424 = vmax.f32 %v421, 0.0
  %v425 = vand.u32 2147483647, %v421
  %v426 = vsub.f32 0.0, %v425
  %v427 = vmul.f32 %v426, 1.442695
  %v428 = vpow.pop %v427
  %v429 = vadd.f32 %v428, 1.0
  %v430 = vlog2.pop %v429
  %v431 = vmul.f32 %v430, 0.6931472
  %v432 = vmul.f32 -0.5, %v428
  %v433 = vadd.f32 %v432, 1.0
  %v434 = vmul.f32 %v433, %v428
  %v435 = vand.u32 2147483647, %v428
  %vm436 = vcmp.lt.f32.partialorder %v435, 0.0004427343
  %v437 = vsel %vm436, %v434, %v431
  %v438 = vadd.f32 %v424, %v437
  %v439 = vrot.slane %v20, 2
  %v441 = vmul.f32 %v438, %v439
  %v443 = vrot.slane %v441, 2
  %v445 = vadd.f32 %v421, %v443
  %v446 = vmul.f32 %v20, %v20
  %v447 = vmul.f32 %v446, -0.5
  %v448 = vlog2.pop %v438
  %v449 = vmul.f32 %v448, 0.6931472
  %v451 = vrot.slane %v449, 6
  %v453 = vsub.f32 %v447, %v451
  %v454 = vsub.f32 %v453, 0.9189385
  %v455 = vtanh.pop %v445
  %v456 = vtanh.pop %v455
  %v457 = vmul.f32 %v456, %v456
  %v458 = vsub.f32 1.0, %v457
  %v459 = vadd.f32 %v458, 1e-07
  %v460 = vlog2.pop %v459
  %v461 = vmul.f32 %v460, 0.6931472
  %v463 = vrot.slane %v461, 4
  %v465 = vsub.f32 %v454, %v463
  %v466 = vmul.f32 %v455, 2.0
  %vm467 = vcmask 9216
  %468 = vst.msk [vmem:[%s5] sm:$0x3] %vm467, %v466
  %vm469 = vcmask 13316
  %470 = vst.msk [vmem:[%s5 - $0x2] sm:$0x30] %vm469, %v465
  // Predicated region
  $region22: #{tpu_custom_call.1} parent=0 // pred_check
    _
  $region23: #{tpu_custom_call.1} parent=0 // pred_check_branch
    %472 = sbr.rel (0) target = $region25
  $region24: #{tpu_custom_call.1} parent=0 // pred_region
    _
  $region25: #{tpu_custom_call.1} parent=0 // pred_fallthru
    _
  // Predicated region
  $region26: #{tpu_custom_call.1} parent=0 // pred_check
    _
  $region27: #{tpu_custom_call.1} parent=0 // pred_check_branch
    %474 = sbr.rel (0) target = $region29
  $region28: #{tpu_custom_call.1} parent=0 // pred_region
    _
  $region29: #{tpu_custom_call.1} parent=0 // pred_fallthru
    _

</llo_original>
